<compile_context>
chip_gen: v7x
topology: tpu7x:2x2x1
jax: 0.10.0
libtpu: 0.0.40
codegen_flags: <defaults>
</compile_context>

<pallas_src>
import functools

import jax
import jax.numpy as jnp
from jax import lax
from jax.experimental import pallas as pl
from jax.experimental.pallas import tpu as pltpu

_LANES = 128
_MIN_ROWS = 16                         # rows multiple of 16 -> f32 & bf16 tile safe
_MIN_TILE_ELEMS = _MIN_ROWS * _LANES   # 2048 elements
_DEFAULT_BLOCK_ROWS = 1024             # (1024, 128) f32 = 512 KiB per input per buffer


def _round_up(n, m):
    return ((n + m - 1) // m) * m


def _prep(x, pad_value, padded_elems):
    """Flatten to a (rows, 128) lane-dense slab in the ORIGINAL dtype.

    Copy-free when x.size == padded_elems (the common aligned case); otherwise
    only the tail is materialized, filled with the MSE target so the padding
    contributes zero error.  Returns (slab, true_element_count).
    """
    flat = jnp.ravel(x)
    n = flat.shape[0]
    if padded_elems != n:
        flat = jnp.concatenate(
            [flat, jnp.full((padded_elems - n,), pad_value, dtype=flat.dtype)]
        )
    return flat.reshape(padded_elems // _LANES, _LANES), n


def _disc_loss_kernel(cart_ref, grey_ref, smooth_ref, gen_ref, out_ref, acc_ref,
                      *, w_adv, n_cart, n_grey, n_smooth, n_gen,
                      block_rows, total_rows, needs_mask):
    i = pl.program_id(0)

    @pl.when(i == 0)
    def _init():
        acc_ref[...] = jnp.zeros_like(acc_ref)

    if needs_mask:
        rows = lax.broadcasted_iota(jnp.int32, (block_rows, _LANES), 0)
        in_bounds = (rows + i * block_rows) < total_rows
    else:
        in_bounds = None

    def accumulate(slot, ref, target):
        t = ref[...].astype(jnp.float32)
        if in_bounds is not None:
            # Replace out-of-bounds garbage rows of a partial last block with
            # the MSE target -> they contribute exactly zero error.
            t = jnp.where(in_bounds, t, target)
        d = t - target if target != 0.0 else t
        # Pure-VPU partial reduction into an (8, 128) slab; the cross-lane
        # reduce is deferred to the finalize branch.
        sq = (d * d).reshape(block_rows // 8, 8, _LANES)
        acc_ref[slot] += jnp.sum(sq, axis=0)

    accumulate(0, cart_ref, 1.0)     # MSE vs ones
    accumulate(1, grey_ref, 0.0)     # MSE vs zeros
    accumulate(2, smooth_ref, 0.0)   # MSE vs zeros
    accumulate(3, gen_ref, 0.0)      # MSE vs zeros

    @pl.when(i == pl.num_programs(0) - 1)
    def _finalize():
        s_cart = jnp.sum(acc_ref[0])
        s_grey = jnp.sum(acc_ref[1])
        s_smooth = jnp.sum(acc_ref[2])
        s_gen = jnp.sum(acc_ref[3])
        out_ref[0, 0] = (
            w_adv * (s_cart / n_cart)
            + (s_gen / n_gen)
            + (s_grey / n_grey)
            + 0.1 * (s_smooth / n_smooth)
        )


def discriminator_loss(d_cartoon, d_cartoon_grey, d_cartoon_smooth_grey,
                       d_generated, w_adv=300.0, block_rows=_DEFAULT_BLOCK_ROWS):
    """JAX/Pallas equivalent of DiscriminatorLoss.forward. Returns a scalar f32."""
    inputs = (d_cartoon, d_cartoon_grey, d_cartoon_smooth_grey, d_generated)
    padded_elems = _round_up(max(int(x.size) for x in inputs), _MIN_TILE_ELEMS)

    cart2d, n_cart = _prep(d_cartoon, 1.0, padded_elems)
    grey2d, n_grey = _prep(d_cartoon_grey, 0.0, padded_elems)
    smooth2d, n_smooth = _prep(d_cartoon_smooth_grey, 0.0, padded_elems)
    gen2d, n_gen = _prep(d_generated, 0.0, padded_elems)

    total_rows = padded_elems // _LANES
    block_rows = min(block_rows, total_rows)
    block_rows = max(_MIN_ROWS, (block_rows // _MIN_ROWS) * _MIN_ROWS)
    grid = pl.cdiv(total_rows, block_rows)
    needs_mask = (total_rows % block_rows) != 0

    kernel = functools.partial(
        _disc_loss_kernel,
        w_adv=float(w_adv),
        n_cart=float(n_cart), n_grey=float(n_grey),
        n_smooth=float(n_smooth), n_gen=float(n_gen),
        block_rows=block_rows, total_rows=total_rows, needs_mask=needs_mask,
    )

    in_spec = pl.BlockSpec((block_rows, _LANES), lambda i: (i, 0))

    out = pl.pallas_call(
        kernel,
        out_shape=jax.ShapeDtypeStruct((1, 1), jnp.float32),
        grid_spec=pltpu.PrefetchScalarGridSpec(
            num_scalar_prefetch=0,
            grid=(grid,),
            in_specs=[in_spec, in_spec, in_spec, in_spec],
            out_specs=pl.BlockSpec(memory_space=pltpu.SMEM),
            scratch_shapes=[pltpu.VMEM((4, 8, _LANES), jnp.float32)],
        ),
        compiler_params=pltpu.CompilerParams(
            dimension_semantics=("arbitrary",),
        ),
    )(cart2d, grey2d, smooth2d, gen2d)
    # TODO(synk): on v7x a leading "parallel" grid axis could split the row
    # range across both TensorCores for ~2x streaming bandwidth.
    return out[0, 0]


def _reference(d_cartoon, d_grey, d_smooth, d_gen, w_adv=300.0):
    mse = lambda x, t: jnp.mean((x.astype(jnp.float32) - t) ** 2)
    return (w_adv * mse(d_cartoon, 1.0) + mse(d_gen, 0.0)
            + mse(d_grey, 0.0) + 0.1 * mse(d_smooth, 0.0))


if __name__ == "__main__":
    key = jax.random.PRNGKey(0)
    k1, k2, k3, k4 = jax.random.split(key, 4)
    # Discriminator patch outputs, NCHW: batch=2, channels=4, spatial=16x16.
    shape = (2, 4, 16, 16)
    d_cartoon = jax.random.normal(k1, shape, dtype=jnp.float32)
    d_cartoon_grey = jax.random.normal(k2, shape, dtype=jnp.float32)
    d_cartoon_smooth_grey = jax.random.normal(k3, shape, dtype=jnp.float32)
    d_generated = jax.random.normal(k4, shape, dtype=jnp.float32)

    loss = discriminator_loss(
        d_cartoon, d_cartoon_grey, d_cartoon_smooth_grey, d_generated, w_adv=300.0
    )
    loss = jax.block_until_ready(loss)

    ref = _reference(
        d_cartoon, d_cartoon_grey, d_cartoon_smooth_grey, d_generated, w_adv=300.0
    )
    assert jnp.allclose(loss, ref, rtol=1e-5, atol=1e-5), (loss, ref)
    print("KERNEL_OK")
</pallas_src>

<mosaic_0001>
module attributes {stable_mosaic.version = 11 : i64} {
  func.func @_disc_loss_kernel(%arg0: i32, %arg1: memref<16x128xf32, #tpu.memory_space<vmem>>, %arg2: memref<16x128xf32, #tpu.memory_space<vmem>>, %arg3: memref<16x128xf32, #tpu.memory_space<vmem>>, %arg4: memref<16x128xf32, #tpu.memory_space<vmem>>, %arg5: memref<1x1xf32, #tpu.memory_space<smem>>, %arg6: memref<4x8x128xf32, #tpu.memory_space<vmem>>) attributes {dimension_semantics = [#tpu.dimension_semantics<arbitrary>], iteration_bounds = array<i64: 1>, scalar_prefetch = 0 : i64, scratch_operands = 1 : i64, tpu.core_type = #tpu.core_type<tc>, window_params = [{transform_indices = @transform_0, window_bounds = array<i64: 16, 128>}, {transform_indices = @transform_1, window_bounds = array<i64: 16, 128>}, {transform_indices = @transform_2, window_bounds = array<i64: 16, 128>}, {transform_indices = @transform_3, window_bounds = array<i64: 16, 128>}, {transform_indices = @transform_4, window_bounds = array<i64: 1, 1>}]} {
    %c0_i32 = arith.constant 0 : i32
    %0 = arith.cmpi eq, %arg0, %c0_i32 : i32
    %1 = arith.extui %0 : i1 to i32
    %c0_i32_0 = arith.constant 0 : i32
    %2 = arith.cmpi ne, %1, %c0_i32_0 : i32
    scf.if %2 {
      %cst_35 = arith.constant 0.000000e+00 : f32
      %48 = vector.broadcast %cst_35 : f32 to vector<4x8x128xf32>
      %c0_36 = arith.constant 0 : index
      %c0_37 = arith.constant 0 : index
      %c0_38 = arith.constant 0 : index
      %49 = vector.load %arg6[%c0_36, %c0_37, %c0_38] : memref<4x8x128xf32, #tpu.memory_space<vmem>>, vector<4x8x128xf32>
      tpu.vector_store %arg6[%c0_36, %c0_37, %c0_38], %48 {strides = array<i32>} : memref<4x8x128xf32, #tpu.memory_space<vmem>>, vector<4x8x128xf32>,
    } else {
    }
    %c0 = arith.constant 0 : index
    %c0_1 = arith.constant 0 : index
    %3 = vector.load %arg1[%c0, %c0_1] : memref<16x128xf32, #tpu.memory_space<vmem>>, vector<16x128xf32>
    %cst = arith.constant 1.000000e+00 : f32
    %4 = vector.broadcast %cst : f32 to vector<16x128xf32>
    %5 = arith.subf %3, %4 : vector<16x128xf32>
    %6 = arith.mulf %5, %5 : vector<16x128xf32>
    %7 = vector.shape_cast %6 : vector<16x128xf32> to vector<2x8x128xf32>
    %c0_2 = arith.constant 0 : index
    %c0_3 = arith.constant 0 : index
    %c0_4 = arith.constant 0 : index
    %8 = vector.load %arg6[%c0_2, %c0_3, %c0_4] : memref<4x8x128xf32, #tpu.memory_space<vmem>>, vector<1x8x128xf32>
    %9 = vector.shape_cast %8 : vector<1x8x128xf32> to vector<8x128xf32>
    %cst_5 = arith.constant dense<0.000000e+00> : vector<8x128xf32>
    %10 = vector.multi_reduction <add>, %7, %cst_5 [0] : vector<2x8x128xf32> to vector<8x128xf32>
    %11 = arith.addf %9, %10 : vector<8x128xf32>
    %c0_6 = arith.constant 0 : index
    %c0_7 = arith.constant 0 : index
    %c0_8 = arith.constant 0 : index
    %12 = vector.load %arg6[%c0_6, %c0_7, %c0_8] : memref<4x8x128xf32, #tpu.memory_space<vmem>>, vector<1x8x128xf32>
    %13 = vector.shape_cast %12 : vector<1x8x128xf32> to vector<8x128xf32>
    %14 = vector.shape_cast %11 : vector<8x128xf32> to vector<1x8x128xf32>
    tpu.vector_store %arg6[%c0_6, %c0_7, %c0_8], %14 {strides = array<i32>} : memref<4x8x128xf32, #tpu.memory_space<vmem>>, vector<1x8x128xf32>,
    %c0_9 = arith.constant 0 : index
    %c0_10 = arith.constant 0 : index
    %15 = vector.load %arg2[%c0_9, %c0_10] : memref<16x128xf32, #tpu.memory_space<vmem>>, vector<16x128xf32>
    %16 = arith.mulf %15, %15 : vector<16x128xf32>
    %17 = vector.shape_cast %16 : vector<16x128xf32> to vector<2x8x128xf32>
    %c1 = arith.constant 1 : index
    %c0_11 = arith.constant 0 : index
    %c0_12 = arith.constant 0 : index
    %18 = vector.load %arg6[%c1, %c0_11, %c0_12] : memref<4x8x128xf32, #tpu.memory_space<vmem>>, vector<1x8x128xf32>
    %19 = vector.shape_cast %18 : vector<1x8x128xf32> to vector<8x128xf32>
    %cst_13 = arith.constant dense<0.000000e+00> : vector<8x128xf32>
    %20 = vector.multi_reduction <add>, %17, %cst_13 [0] : vector<2x8x128xf32> to vector<8x128xf32>
    %21 = arith.addf %19, %20 : vector<8x128xf32>
    %c1_14 = arith.constant 1 : index
    %c0_15 = arith.constant 0 : index
    %c0_16 = arith.constant 0 : index
    %22 = vector.load %arg6[%c1_14, %c0_15, %c0_16] : memref<4x8x128xf32, #tpu.memory_space<vmem>>, vector<1x8x128xf32>
    %23 = vector.shape_cast %22 : vector<1x8x128xf32> to vector<8x128xf32>
    %24 = vector.shape_cast %21 : vector<8x128xf32> to vector<1x8x128xf32>
    tpu.vector_store %arg6[%c1_14, %c0_15, %c0_16], %24 {strides = array<i32>} : memref<4x8x128xf32, #tpu.memory_space<vmem>>, vector<1x8x128xf32>,
    %c0_17 = arith.constant 0 : index
    %c0_18 = arith.constant 0 : index
    %25 = vector.load %arg3[%c0_17, %c0_18] : memref<16x128xf32, #tpu.memory_space<vmem>>, vector<16x128xf32>
    %26 = arith.mulf %25, %25 : vector<16x128xf32>
    %27 = vector.shape_cast %26 : vector<16x128xf32> to vector<2x8x128xf32>
    %c2 = arith.constant 2 : index
    %c0_19 = arith.constant 0 : index
    %c0_20 = arith.constant 0 : index
    %28 = vector.load %arg6[%c2, %c0_19, %c0_20] : memref<4x8x128xf32, #tpu.memory_space<vmem>>, vector<1x8x128xf32>
    %29 = vector.shape_cast %28 : vector<1x8x128xf32> to vector<8x128xf32>
    %cst_21 = arith.constant dense<0.000000e+00> : vector<8x128xf32>
    %30 = vector.multi_reduction <add>, %27, %cst_21 [0] : vector<2x8x128xf32> to vector<8x128xf32>
    %31 = arith.addf %29, %30 : vector<8x128xf32>
    %c2_22 = arith.constant 2 : index
    %c0_23 = arith.constant 0 : index
    %c0_24 = arith.constant 0 : index
    %32 = vector.load %arg6[%c2_22, %c0_23, %c0_24] : memref<4x8x128xf32, #tpu.memory_space<vmem>>, vector<1x8x128xf32>
    %33 = vector.shape_cast %32 : vector<1x8x128xf32> to vector<8x128xf32>
    %34 = vector.shape_cast %31 : vector<8x128xf32> to vector<1x8x128xf32>
    tpu.vector_store %arg6[%c2_22, %c0_23, %c0_24], %34 {strides = array<i32>} : memref<4x8x128xf32, #tpu.memory_space<vmem>>, vector<1x8x128xf32>,
    %c0_25 = arith.constant 0 : index
    %c0_26 = arith.constant 0 : index
    %35 = vector.load %arg4[%c0_25, %c0_26] : memref<16x128xf32, #tpu.memory_space<vmem>>, vector<16x128xf32>
    %36 = arith.mulf %35, %35 : vector<16x128xf32>
    %37 = vector.shape_cast %36 : vector<16x128xf32> to vector<2x8x128xf32>
    %c3 = arith.constant 3 : index
    %c0_27 = arith.constant 0 : index
    %c0_28 = arith.constant 0 : index
    %38 = vector.load %arg6[%c3, %c0_27, %c0_28] : memref<4x8x128xf32, #tpu.memory_space<vmem>>, vector<1x8x128xf32>
    %39 = vector.shape_cast %38 : vector<1x8x128xf32> to vector<8x128xf32>
    %cst_29 = arith.constant dense<0.000000e+00> : vector<8x128xf32>
    %40 = vector.multi_reduction <add>, %37, %cst_29 [0] : vector<2x8x128xf32> to vector<8x128xf32>
    %41 = arith.addf %39, %40 : vector<8x128xf32>
    %c3_30 = arith.constant 3 : index
    %c0_31 = arith.constant 0 : index
    %c0_32 = arith.constant 0 : index
    %42 = vector.load %arg6[%c3_30, %c0_31, %c0_32] : memref<4x8x128xf32, #tpu.memory_space<vmem>>, vector<1x8x128xf32>
    %43 = vector.shape_cast %42 : vector<1x8x128xf32> to vector<8x128xf32>
    %44 = vector.shape_cast %41 : vector<8x128xf32> to vector<1x8x128xf32>
    tpu.vector_store %arg6[%c3_30, %c0_31, %c0_32], %44 {strides = array<i32>} : memref<4x8x128xf32, #tpu.memory_space<vmem>>, vector<1x8x128xf32>,
    %c0_i32_33 = arith.constant 0 : i32
    %45 = arith.cmpi eq, %arg0, %c0_i32_33 : i32
    %46 = arith.extui %45 : i1 to i32
    %c0_i32_34 = arith.constant 0 : i32
    %47 = arith.cmpi ne, %46, %c0_i32_34 : i32
    scf.if %47 {
      %c0_35 = arith.constant 0 : index
      %c0_36 = arith.constant 0 : index
      %c0_37 = arith.constant 0 : index
      %48 = vector.load %arg6[%c0_35, %c0_36, %c0_37] : memref<4x8x128xf32, #tpu.memory_space<vmem>>, vector<1x8x128xf32>
      %49 = vector.shape_cast %48 : vector<1x8x128xf32> to vector<8x128xf32>
      %50 = vector.shape_cast %49 : vector<8x128xf32> to vector<1x8x128xf32>
      %cst_38 = arith.constant dense<0.000000e+00> : vector<1xf32>
      %51 = vector.multi_reduction <add>, %50, %cst_38 [1, 2] : vector<1x8x128xf32> to vector<1xf32>
      %52 = vector.shape_cast %51 : vector<1xf32> to vector<1x1x1xf32>
      %53 = vector.extract %52[0, 0, 0] : f32 from vector<1x1x1xf32>
      %c1_39 = arith.constant 1 : index
      %c0_40 = arith.constant 0 : index
      %c0_41 = arith.constant 0 : index
      %54 = vector.load %arg6[%c1_39, %c0_40, %c0_41] : memref<4x8x128xf32, #tpu.memory_space<vmem>>, vector<1x8x128xf32>
      %55 = vector.shape_cast %54 : vector<1x8x128xf32> to vector<8x128xf32>
      %56 = vector.shape_cast %55 : vector<8x128xf32> to vector<1x8x128xf32>
      %cst_42 = arith.constant dense<0.000000e+00> : vector<1xf32>
      %57 = vector.multi_reduction <add>, %56, %cst_42 [1, 2] : vector<1x8x128xf32> to vector<1xf32>
      %58 = vector.shape_cast %57 : vector<1xf32> to vector<1x1x1xf32>
      %59 = vector.extract %58[0, 0, 0] : f32 from vector<1x1x1xf32>
      %c2_43 = arith.constant 2 : index
      %c0_44 = arith.constant 0 : index
      %c0_45 = arith.constant 0 : index
      %60 = vector.load %arg6[%c2_43, %c0_44, %c0_45] : memref<4x8x128xf32, #tpu.memory_space<vmem>>, vector<1x8x128xf32>
      %61 = vector.shape_cast %60 : vector<1x8x128xf32> to vector<8x128xf32>
      %62 = vector.shape_cast %61 : vector<8x128xf32> to vector<1x8x128xf32>
      %cst_46 = arith.constant dense<0.000000e+00> : vector<1xf32>
      %63 = vector.multi_reduction <add>, %62, %cst_46 [1, 2] : vector<1x8x128xf32> to vector<1xf32>
      %64 = vector.shape_cast %63 : vector<1xf32> to vector<1x1x1xf32>
      %65 = vector.extract %64[0, 0, 0] : f32 from vector<1x1x1xf32>
      %c3_47 = arith.constant 3 : index
      %c0_48 = arith.constant 0 : index
      %c0_49 = arith.constant 0 : index
      %66 = vector.load %arg6[%c3_47, %c0_48, %c0_49] : memref<4x8x128xf32, #tpu.memory_space<vmem>>, vector<1x8x128xf32>
      %67 = vector.shape_cast %66 : vector<1x8x128xf32> to vector<8x128xf32>
      %68 = vector.shape_cast %67 : vector<8x128xf32> to vector<1x8x128xf32>
      %cst_50 = arith.constant dense<0.000000e+00> : vector<1xf32>
      %69 = vector.multi_reduction <add>, %68, %cst_50 [1, 2] : vector<1x8x128xf32> to vector<1xf32>
      %70 = vector.shape_cast %69 : vector<1xf32> to vector<1x1x1xf32>
      %71 = vector.extract %70[0, 0, 0] : f32 from vector<1x1x1xf32>
      %cst_51 = arith.constant 2.048000e+03 : f32
      %72 = arith.divf %53, %cst_51 : f32
      %cst_52 = arith.constant 3.000000e+02 : f32
      %73 = arith.mulf %cst_52, %72 : f32
      %cst_53 = arith.constant 2.048000e+03 : f32
      %74 = arith.divf %71, %cst_53 : f32
      %75 = arith.addf %73, %74 : f32
      %cst_54 = arith.constant 2.048000e+03 : f32
      %76 = arith.divf %59, %cst_54 : f32
      %77 = arith.addf %75, %76 : f32
      %cst_55 = arith.constant 2.048000e+03 : f32
      %78 = arith.divf %65, %cst_55 : f32
      %cst_56 = arith.constant 1.000000e-01 : f32
      %79 = arith.mulf %cst_56, %78 : f32
      %80 = arith.addf %77, %79 : f32
      %c0_57 = arith.constant 0 : index
      %c0_58 = arith.constant 0 : index
      %81 = memref.load %arg5[%c0_57, %c0_58] : memref<1x1xf32, #tpu.memory_space<smem>>
      memref.store %80, %arg5[%c0_57, %c0_58] : memref<1x1xf32, #tpu.memory_space<smem>>
    } else {
    }
    return
  }
  func.func @transform_0(%arg0: i32) -> (i32, i32) {
    %c0_i32 = arith.constant 0 : i32
    %c0_i32_0 = arith.constant 0 : i32
    return %arg0, %c0_i32 : i32, i32
  }
  func.func @transform_1(%arg0: i32) -> (i32, i32) {
    %c0_i32 = arith.constant 0 : i32
    %c0_i32_0 = arith.constant 0 : i32
    return %arg0, %c0_i32 : i32, i32
  }
  func.func @transform_2(%arg0: i32) -> (i32, i32) {
    %c0_i32 = arith.constant 0 : i32
    %c0_i32_0 = arith.constant 0 : i32
    return %arg0, %c0_i32 : i32, i32
  }
  func.func @transform_3(%arg0: i32) -> (i32, i32) {
    %c0_i32 = arith.constant 0 : i32
    %c0_i32_0 = arith.constant 0 : i32
    return %arg0, %c0_i32 : i32, i32
  }
  func.func @transform_4(%arg0: i32) -> (i32, i32) {
    %c0_i32 = arith.constant 0 : i32
    %c0_i32_0 = arith.constant 0 : i32
    %c0_i32_1 = arith.constant 0 : i32
    return %c0_i32, %c0_i32_0 : i32, i32
  }
}

</mosaic_0001>

<llo_original>
// kernel: tpu_custom_call.1
$region0: #{tpu_custom_call.1}
  #allocation0 [shape = 'u32[]', space=smem, size = 0x4, offset = 0x4, fixed_abs, tag = 'smem constant byte address 0x4 - core index']
  #allocation1 [shape = 'u32[144,128]{1,0:T(1,128)}', space=vmem, size = 0x12000, scoped, tag = 'internal scratch']
  #allocation2 [shape = 'f32[4,8,128]{2,1,0:T(8,128)}', space=vmem, size = 0x4000, scoped, tag = 'scratch operand']
  %s0 = inlined_call_operand.hbm [shape: f32[16,128], index: 0, kind: input, shape index: {}]
  %s1 = inlined_call_operand.hbm [shape: f32[16,128], index: 1, kind: input, shape index: {}]
  %s2 = inlined_call_operand.hbm [shape: f32[16,128], index: 2, kind: input, shape index: {}]
  %s3 = inlined_call_operand.hbm [shape: f32[16,128], index: 3, kind: input, shape index: {}]
  %s4 = inlined_call_operand.hbm [shape: f32[1,1], index: 4, kind: output, shape index: {}]
  %s5 = sld [smem:[#allocation0]]
  $region50: #{tpu_custom_call.1} parent=0
    _
  %s7 = ssub.s32 1, %s5
  %s8 = scalar_select 0, %s7, %s5
  $region1: #{tpu_custom_call.1} parent=0
    #allocation3 [shape = 'u8[8192]{0}', space=vmem, size = 0x2000, scoped, tag = 'input window, operand 0, single buffered']
    #allocation4 [shape = 's32[1]{0}', space=sflag, size = 0x4, scoped, tag = 'scoped memory for tpu_custom_call.1']
    #allocation5 [shape = 's32[1]{0}', space=sflag, size = 0x4, scoped, tag = 'scoped memory for tpu_custom_call.1']
    #allocation6 [shape = 'u8[8192]{0}', space=vmem, size = 0x2000, scoped, tag = 'input window, operand 1, single buffered']
    #allocation7 [shape = 's32[1]{0}', space=sflag, size = 0x4, scoped, tag = 'scoped memory for tpu_custom_call.1']
    #allocation8 [shape = 'u8[8192]{0}', space=vmem, size = 0x2000, scoped, tag = 'input window, operand 2, single buffered']
    #allocation9 [shape = 'u8[8192]{0}', space=vmem, size = 0x2000, scoped, tag = 'input window, operand 3, single buffered']
    #allocation10 [shape = 's32[1]{0}', space=sflag, size = 0x4, scoped, tag = 'scoped memory for tpu_custom_call.1']
    #allocation11 [shape = 'u8[512]{0}', space=smem, size = 0x200, scoped, tag = 'output window, operand 0, single buffered']
    %9 = vsyncpa [#allocation4], 0
    %10 = vsyncpa [#allocation7], 0
    %11 = vsyncpa [#allocation10], 0
    %12 = vsyncpa [#allocation5], 0
    // Predicated region
    $region2: #{tpu_custom_call.1} parent=1 // pred_check
      _
    $region3: #{tpu_custom_call.1} parent=1 // pred_check_branch
      %14 = sbr.rel (0) target = $region5
    $region4: #{tpu_custom_call.1} parent=1 // pred_region
      %s16 = ssub.s32 256, 256
      %17 = vsyncadd [#allocation4], %s16
      %s18 = sshll.u32 [#allocation3], 4
      %s19 = int_to_ptr.vmem [resolvable:$true] %s18
      %24 = dma.hbm_to_vmem [thread:$0]  %s0, 256, %s19, [#allocation4], 128, 128, 8
    $region5: #{tpu_custom_call.1} parent=1 // pred_fallthru
      _
    // Predicated region
    $region6: #{tpu_custom_call.1} parent=1 // pred_check
      _
    $region7: #{tpu_custom_call.1} parent=1 // pred_check_branch
      %26 = sbr.rel (0) target = $region9
    $region8: #{tpu_custom_call.1} parent=1 // pred_region
      %s28 = ssub.s32 256, 256
      %29 = vsyncadd [#allocation7], %s28
      %s30 = sshll.u32 [#allocation6], 4
      %s31 = int_to_ptr.vmem [resolvable:$true] %s30
      %36 = dma.hbm_to_vmem [thread:$0]  %s1, 256, %s31, [#allocation7], 128, 128, 8
    $region9: #{tpu_custom_call.1} parent=1 // pred_fallthru
      _
    // Predicated region
    $region10: #{tpu_custom_call.1} parent=1 // pred_check
      _
    $region11: #{tpu_custom_call.1} parent=1 // pred_check_branch
      %38 = sbr.rel (0) target = $region13
    $region12: #{tpu_custom_call.1} parent=1 // pred_region
      %s40 = ssub.s32 256, 256
      %41 = vsyncadd [#allocation7], %s40
      %s42 = sshll.u32 [#allocation8], 4
      %s43 = int_to_ptr.vmem [resolvable:$true] %s42
      %48 = dma.hbm_to_vmem [thread:$0]  %s2, 256, %s43, [#allocation7], 128, 128, 8
    $region13: #{tpu_custom_call.1} parent=1 // pred_fallthru
      _
    // Predicated region
    $region14: #{tpu_custom_call.1} parent=1 // pred_check
      _
    $region15: #{tpu_custom_call.1} parent=1 // pred_check_branch
      %50 = sbr.rel (0) target = $region17
    $region16: #{tpu_custom_call.1} parent=1 // pred_region
      %s52 = ssub.s32 256, 256
      %53 = vsyncadd [#allocation10], %s52
      %s54 = sshll.u32 [#allocation9], 4
      %s55 = int_to_ptr.vmem [resolvable:$true] %s54
      %60 = dma.hbm_to_vmem [thread:$0]  %s3, 256, %s55, [#allocation10], 128, 128, 8
    $region17: #{tpu_custom_call.1} parent=1 // pred_fallthru
      _
    // Predicated region
    $region18: #{tpu_custom_call.1} parent=1 // pred_check
      _
    $region19: #{tpu_custom_call.1} parent=1 // pred_check_branch
      %62 = sbr.rel (0) target = $region21
    $region20: #{tpu_custom_call.1} parent=1 // pred_region
      %63 = dma.done [#allocation4], 256
    $region21: #{tpu_custom_call.1} parent=1 // pred_fallthru
      _
    // Predicated region
    $region22: #{tpu_custom_call.1} parent=1 // pred_check
      _
    $region23: #{tpu_custom_call.1} parent=1 // pred_check_branch
      %65 = sbr.rel (0) target = $region25
    $region24: #{tpu_custom_call.1} parent=1 // pred_region
      %66 = dma.done [#allocation7], 256
    $region25: #{tpu_custom_call.1} parent=1 // pred_fallthru
      _
    // Predicated region
    $region26: #{tpu_custom_call.1} parent=1 // pred_check
      _
    $region27: #{tpu_custom_call.1} parent=1 // pred_check_branch
      %68 = sbr.rel (0) target = $region29
    $region28: #{tpu_custom_call.1} parent=1 // pred_region
      %69 = dma.done [#allocation7], 256
    $region29: #{tpu_custom_call.1} parent=1 // pred_fallthru
      _
    // Predicated region
    $region30: #{tpu_custom_call.1} parent=1 // pred_check
      _
    $region31: #{tpu_custom_call.1} parent=1 // pred_check_branch
      %71 = sbr.rel (0) target = $region33
    $region32: #{tpu_custom_call.1} parent=1 // pred_region
      %72 = dma.done [#allocation10], 256
    $region33: #{tpu_custom_call.1} parent=1 // pred_fallthru
      _
    %p73 = scmp.eq.s32.totalorder 0, 0
    // Predicated region
    $region34: #{tpu_custom_call.1} parent=1 // pred_check
      %p74 = pneg %p73
    $region35: #{tpu_custom_call.1} parent=1 // pred_check_branch
      %76 = sbr.rel (%p74) target = $region37
    $region36: #{tpu_custom_call.1} parent=1 // pred_region
      %77 = vst [vmem:[#allocation2] sm:$0xff] 0.0
      %78 = vst [vmem:[#allocation2 + $0x8] sm:$0xff] 0.0
      %79 = vst [vmem:[#allocation2 + $0x10] sm:$0xff] 0.0
      %80 = vst [vmem:[#allocation2 + $0x18] sm:$0xff] 0.0
    $region37: #{tpu_custom_call.1} parent=1 // pred_fallthru
      _
    %v81 = vld [vmem:[#allocation3] sm:$0xff]
    %v82 = vld [vmem:[#allocation3 + $0x8] sm:$0xff]
    %v83 = vsub.f32 %v81, 1.0
    %v84 = vsub.f32 %v82, 1.0
    %v85 = vmul.f32 %v83, %v83
    %v86 = vmul.f32 %v84, %v84
    %v87 = vld [vmem:[#allocation2] sm:$0xff]
    %v88 = vadd.f32 %v85, %v86
    %v89 = vadd.f32 %v87, %v88
    %90 = vst [vmem:[#allocation2] sm:$0xff] %v89
    %v91 = vld [vmem:[#allocation6] sm:$0xff]
    %v92 = vld [vmem:[#allocation6 + $0x8] sm:$0xff]
    %v93 = vmul.f32 %v91, %v91
    %v94 = vmul.f32 %v92, %v92
    %s95 = scalar_lea.vmem [#allocation2], 8
    %v96 = vld [vmem:[%s95] sm:$0xff]
    %v97 = vadd.f32 %v93, %v94
    %v98 = vadd.f32 %v96, %v97
    %99 = vst [vmem:[%s95] sm:$0xff] %v98
    %v100 = vld [vmem:[#allocation8] sm:$0xff]
    %v101 = vld [vmem:[#allocation8 + $0x8] sm:$0xff]
    %v102 = vmul.f32 %v100, %v100
    %v103 = vmul.f32 %v101, %v101
    %s104 = scalar_lea.vmem [#allocation2], 16
    %v105 = vld [vmem:[%s104] sm:$0xff]
    %v106 = vadd.f32 %v102, %v103
    %v107 = vadd.f32 %v105, %v106
    %108 = vst [vmem:[%s104] sm:$0xff] %v107
    %v109 = vld [vmem:[#allocation9] sm:$0xff]
    %v110 = vld [vmem:[#allocation9 + $0x8] sm:$0xff]
    %v111 = vmul.f32 %v109, %v109
    %v112 = vmul.f32 %v110, %v110
    %s113 = scalar_lea.vmem [#allocation2], 24
    %v114 = vld [vmem:[%s113] sm:$0xff]
    %v115 = vadd.f32 %v111, %v112
    %v116 = vadd.f32 %v114, %v115
    %117 = vst [vmem:[%s113] sm:$0xff] %v116
    // Predicated region
    $region38: #{tpu_custom_call.1} parent=1 // pred_check
      %p118 = pneg %p73
    $region39: #{tpu_custom_call.1} parent=1 // pred_check_branch
      %120 = sbr.rel (%p118) target = $region41
    $region40: #{tpu_custom_call.1} parent=1 // pred_region
      %v121 = vld [vmem:[#allocation2] sm:$0xff]
      %122 = vadd.xlane.f32.xlu0 %v121
      %v123 = vpop.xlane.xlu0 %122
      %v124 = vrot.slane %v123, 4
      %v125 = vadd.f32 %v123, %v124
      %v126 = vrot.slane %v125, 2
      %v127 = vadd.f32 %v125, %v126
      %v128 = vrot.slane %v127, 1
      %v129 = vadd.f32 %v127, %v128
      %s130 = vtos %v129
      %v131 = vld [vmem:[%s95] sm:$0xff]
      %132 = vadd.xlane.f32.xlu0 %v131
      %v133 = vpop.xlane.xlu0 %132
      %v134 = vrot.slane %v133, 4
      %v135 = vadd.f32 %v133, %v134
      %v136 = vrot.slane %v135, 2
      %v137 = vadd.f32 %v135, %v136
      %v138 = vrot.slane %v137, 1
      %v139 = vadd.f32 %v137, %v138
      %s140 = vtos %v139
      %v141 = vld [vmem:[%s104] sm:$0xff]
      %142 = vadd.xlane.f32.xlu0 %v141
      %v143 = vpop.xlane.xlu0 %142
      %v144 = vrot.slane %v143, 4
      %v145 = vadd.f32 %v143, %v144
      %v146 = vrot.slane %v145, 2
      %v147 = vadd.f32 %v145, %v146
      %v148 = vrot.slane %v147, 1
      %v149 = vadd.f32 %v147, %v148
      %s150 = vtos %v149
      %v151 = vld [vmem:[%s113] sm:$0xff]
      %152 = vadd.xlane.f32.xlu0 %v151
      %v153 = vpop.xlane.xlu0 %152
      %v154 = vrot.slane %v153, 4
      %v155 = vadd.f32 %v153, %v154
      %v156 = vrot.slane %v155, 2
      %v157 = vadd.f32 %v155, %v156
      %v158 = vrot.slane %v157, 1
      %v159 = vadd.f32 %v157, %v158
      %s160 = vtos %v159
      %v161 = vrcp.pop 2048.0
      %s162 = vtos %v161
      %s163 = smul.f32 %s130, %s162
      %s164 = smul.f32 %s163, 300.0
      %v165 = vrcp.pop 2048.0
      %s166 = vtos %v165
      %s167 = smul.f32 %s160, %s166
      %s168 = sadd.f32 %s164, %s167
      %v169 = vrcp.pop 2048.0
      %s170 = vtos %v169
      %s171 = smul.f32 %s140, %s170
      %s172 = sadd.f32 %s168, %s171
      %v173 = vrcp.pop 2048.0
      %s174 = vtos %v173
      %s175 = smul.f32 %s150, %s174
      %s176 = smul.f32 %s175, 0.1
      %s177 = sadd.f32 %s172, %s176
      %s178 = scalar_lea.smem [#allocation11], 0
      %179 = sst [smem:[%s178]] %s177
    $region41: #{tpu_custom_call.1} parent=1 // pred_fallthru
      _
    // Predicated region
    $region42: #{tpu_custom_call.1} parent=1 // pred_check
      _
    $region43: #{tpu_custom_call.1} parent=1 // pred_check_branch
      %181 = sbr.rel (0) target = $region45
    $region44: #{tpu_custom_call.1} parent=1 // pred_region
      %s183 = ssub.s32 16, 16
      %184 = vsyncadd [#allocation5], %s183
      %187 = dma.smem_to_hbm [#allocation11], 16, %s4, [#allocation5]
    $region45: #{tpu_custom_call.1} parent=1 // pred_fallthru
      _
    // Predicated region
    $region46: #{tpu_custom_call.1} parent=1 // pred_check
      _
    $region47: #{tpu_custom_call.1} parent=1 // pred_check_branch
      %189 = sbr.rel (0) target = $region49
    $region48: #{tpu_custom_call.1} parent=1 // pred_region
      %190 = dma.done [#allocation5], 16
    $region49: #{tpu_custom_call.1} parent=1 // pred_fallthru
      _
    %191 = sfence
    %192 = vsyncpa [#allocation4], 1
    %193 = vsyncpa [#allocation7], 1
    %194 = vsyncpa [#allocation10], 1
    %195 = vsyncpa [#allocation5], 1

</llo_original>
